<compile_context>
chip_gen: v6e
topology: v6e:2x2x1
jax: 0.10.0
libtpu: 0.0.40
codegen_flags: <defaults>
</compile_context>

<pallas_src>
import jax
import jax.numpy as jnp
from jax.experimental import pallas as pl
from jax.experimental.pallas import tpu as pltpu


# ------------------------------ helpers -------------------------------------

def _round_up(x, m):
    return ((x + m - 1) // m) * m


def _cdiv(a, b):
    return (a + b - 1) // b


_SUBLANE_PACK = {4: 8, 2: 16, 1: 32}   # itemsize -> sublane pack width


# ----------------------------- Pallas kernel --------------------------------

def _make_o_proj_kernel(has_bias: bool, use_scratch: bool):
    """Output-stationary GEMM: out = x @ w_t (+ bias).

    grid = (M, N, K); K is innermost ("arbitrary"), the output block is
    resident across it.  f32 outputs accumulate directly into o_ref;
    low-precision outputs use a f32 VMEM scratch accumulator and cast once.
    """

    def kernel(*refs):
        if use_scratch:
            *in_refs, o_ref, acc_ref = refs
        else:
            *in_refs, o_ref = refs
            acc_ref = o_ref                    # f32 output is the accumulator

        if has_bias:
            x_ref, wt_ref, b_ref = in_refs
        else:
            x_ref, wt_ref = in_refs

        k = pl.program_id(2)

        @pl.when(k == 0)
        def _init():
            if has_bias:
                acc_ref[...] = jnp.broadcast_to(
                    b_ref[...].astype(jnp.float32), acc_ref.shape)
            else:
                acc_ref[...] = jnp.zeros_like(acc_ref)

        acc_ref[...] += jnp.dot(x_ref[...], wt_ref[...],
                                preferred_element_type=jnp.float32)

        if use_scratch:
            @pl.when(k == pl.num_programs(2) - 1)
            def _finalize():
                o_ref[...] = acc_ref[...].astype(o_ref.dtype)

    return kernel


# ------------------------------- wrapper -------------------------------------

def o_proj_pallas(x, weight_t, bias=None):
    """Output projection: x @ weight_t (+ bias).

    x:        (B, S, D_in)  attention output
    weight_t: (K_pad, H)    pre-transposed nn.Linear weight, K zero-padded
                            ONCE at module init (K_pad >= D_in)
    bias:     (H,) or None
    """
    B, S, D_in = x.shape
    K_pad, H = weight_t.shape
    M = B * S
    in_dtype = x.dtype
    out_dtype = x.dtype
    x_item = jnp.dtype(in_dtype).itemsize
    w_item = jnp.dtype(weight_t.dtype).itemsize
    o_item = jnp.dtype(out_dtype).itemsize
    use_scratch = jnp.dtype(out_dtype) != jnp.dtype(jnp.float32)
    has_bias = bias is not None

    # ------------------------------ tile policy ------------------------------
    pack = _SUBLANE_PACK.get(x_item, 8)

    # K_pad was built at init as round_up(D_in, min(512, rnd128(D_in))), so it
    # is either <= 1024 or a multiple of 512: every choice below divides K_pad
    # exactly (no partial K blocks — K garbage would corrupt the accumulation;
    # ragged M/N blocks only produce garbage in rows/cols that are never
    # written back).
    if K_pad <= 1024:
        tk = K_pad
    elif K_pad % 1024 == 0:
        tk = 1024
    else:
        tk = 512

    tm = min(512, _round_up(M, pack))
    grid_m = _cdiv(M, tm)

    # Prefill: large square-ish output tiles cut operand re-streaming.
    # Decode (single M block): grow tn so each step moves a big weight slab
    # and the per-step (~0.35us) overhead is amortized.
    tn = 512 if grid_m > 1 else (2048 if x_item <= 2 else 1024)
    h_pad128 = _round_up(H, 128)
    tn = min(tn, h_pad128)
    if grid_m == 1 and h_pad128 > 128:
        # Keep >= 2 blocks on a parallel axis so both v7x TensorCores get work.
        tn = min(tn, _round_up(_cdiv(h_pad128, 2), 128))
    grid_n = _cdiv(H, tn)
    grid_k = K_pad // tk

    # -------------------- layout plumbing (outside kernel) -------------------
    x2d = x.reshape(M, D_in)
    if D_in != K_pad:   # only the K axis needs zero padding (usually a no-op)
        x2d = jnp.pad(x2d, ((0, 0), (0, K_pad - D_in)))

    in_specs = [pl.BlockSpec((tm, tk), lambda i, j, k: (i, k)),
                pl.BlockSpec((tk, tn), lambda i, j, k: (k, j))]
    operands = [x2d, weight_t]
    if has_bias:
        in_specs.append(pl.BlockSpec((1, tn), lambda i, j, k: (0, j)))
        operands.append(bias.reshape(1, H))

    out_spec = pl.BlockSpec((tm, tn), lambda i, j, k: (i, j))
    scratch_shapes = ([pltpu.VMEM((tm, tn), jnp.float32)]
                      if use_scratch else [])

    # bytes_accessed reflects the real re-read factors (x streamed grid_n
    # times, the weight grid_m times).
    cost = pl.CostEstimate(
        flops=2 * M * K_pad * H,
        transcendentals=0,
        bytes_accessed=int(M * K_pad * x_item * grid_n
                           + K_pad * H * w_item * grid_m
                           + M * H * o_item),
    )

    # Explicit VMEM budget: double-buffered inputs/outputs + accumulator with
    # headroom, capped well below v7x's 64 MiB physical VMEM.
    ws = (2 * (tm * tk * x_item + tk * tn * w_item)
          + 2 * tm * tn * o_item
          + (tm * tn * 4 if use_scratch else 0)
          + (2 * tn * x_item if has_bias else 0))
    vmem_limit = int(min(48 << 20, max(32 << 20, 2 * ws)))

    out2d = pl.pallas_call(
        _make_o_proj_kernel(has_bias, use_scratch),
        out_shape=jax.ShapeDtypeStruct((M, H), out_dtype),
        grid_spec=pltpu.PrefetchScalarGridSpec(
            num_scalar_prefetch=0,
            grid=(grid_m, grid_n, grid_k),
            in_specs=in_specs,
            out_specs=out_spec,
            scratch_shapes=scratch_shapes,
        ),
        compiler_params=pltpu.CompilerParams(
            dimension_semantics=("parallel", "parallel", "arbitrary"),
            vmem_limit_bytes=vmem_limit),
        cost_estimate=cost,
    )(*operands)

    return out2d.reshape(B, S, H)


# ----------------------- Module-equivalent wrapper ---------------------------

def get_number_of_extra_heads(num_heads, tp_degree):
    if num_heads % tp_degree == 0:
        return 0
    return tp_degree - (num_heads % tp_degree)


def get_shardable_head_counts(tp_degree, num_attention_heads, num_key_value_heads):
    # tp_degree=1 path: heads unchanged (mirrors the PyTorch helper).
    updated_attn = num_attention_heads + get_number_of_extra_heads(
        num_attention_heads, tp_degree)
    updated_kv = num_key_value_heads
    if num_attention_heads == num_key_value_heads:
        updated_kv = updated_attn
    elif num_key_value_heads < tp_degree or num_key_value_heads % tp_degree != 0:
        updated_kv = tp_degree  # REPLICATE_TO_TP_DEGREE branch
    return updated_attn, updated_kv


class GroupQueryAttentionO:
    """JAX/Pallas equivalent of GroupQueryAttention_O (tp_degree=1,
    out_proj_kernel_enabled=False): out = attention_output @ W.T (+ b).

    TODO(synk): RowParallelLinear tensor-parallel reduce / sequence-parallel
    reduce-scatter and the LoRA adapter path are not implemented (tp_degree=1
    single-core semantics only).
    """

    def __init__(self, hidden_size, head_dim, num_attention_heads,
                 num_key_value_heads, tp_degree=1, dtype=jnp.float32,
                 bias=False, key=None):
        self.hidden_size = hidden_size
        self.head_dim = head_dim
        self.num_attention_heads, self.num_key_value_heads = \
            get_shardable_head_counts(tp_degree, num_attention_heads,
                                      num_key_value_heads)
        self.dtype = dtype
        self.bias = bias

        d_in = self.num_attention_heads * self.head_dim
        if key is None:
            key = jax.random.PRNGKey(0)
        kw, kb = jax.random.split(key)
        # Deterministic init mimicking nn.Linear's uniform(-1/sqrt(fan_in), ..)
        bound = 1.0 / (d_in ** 0.5)
        self.weight = jax.random.uniform(
            kw, (hidden_size, d_in), dtype=jnp.float32,
            minval=-bound, maxval=bound).astype(dtype)
        self.b = (jax.random.uniform(
            kb, (hidden_size,), dtype=jnp.float32,
            minval=-bound, maxval=bound).astype(dtype) if bias else None)

        # Transpose AND K-zero-pad the static parameter ONCE at init
        # (nothing weight-related is re-padded inside the jitted forward).
        tk_init = min(512, _round_up(d_in, 128))
        k_pad = _round_up(d_in, tk_init)
        weight_t = jnp.asarray(self.weight.T)            # (d_in, hidden_size)
        if k_pad != d_in:
            weight_t = jnp.pad(weight_t, ((0, k_pad - d_in), (0, 0)))
        self.weight_t = weight_t                         # (k_pad, hidden_size)

        self._fwd = jax.jit(o_proj_pallas)

    def __call__(self, attention_output):
        x = attention_output.astype(self.dtype)          # nn.Linear dtype match
        return self._fwd(x, self.weight_t, self.b)


# --------------------------------- main --------------------------------------

if __name__ == "__main__":
    # Small shapes: hidden=32, head_dim=8, 4 attention heads, 2 KV heads,
    # batch=2, seq=8  ->  attention_output: (2, 8, 4*8=32)
    hidden_size = 32
    head_dim = 8
    num_attention_heads = 4
    num_key_value_heads = 2
    B, S = 2, 8

    key = jax.random.PRNGKey(0)
    k_x, k_mod = jax.random.split(key)

    # --- f32, no-bias path (direct accumulation into o_ref, no scratch) -----
    module = GroupQueryAttentionO(
        hidden_size=hidden_size, head_dim=head_dim,
        num_attention_heads=num_attention_heads,
        num_key_value_heads=num_key_value_heads,
        tp_degree=1, dtype=jnp.float32, bias=False, key=k_mod)

    d_in = module.num_attention_heads * module.head_dim
    attention_output = jax.random.normal(k_x, (B, S, d_in), dtype=jnp.float32)

    out = jax.block_until_ready(module(attention_output))
    ref = jnp.einsum("bsd,hd->bsh", attention_output, module.weight)
    assert out.shape == (B, S, hidden_size)
    assert jnp.allclose(out, ref, atol=1e-5, rtol=1e-5), "mismatch vs reference"

    # --- f32, bias + non-tile-aligned M (ragged-block masking path) ---------
    module_b = GroupQueryAttentionO(
        hidden_size=hidden_size, head_dim=head_dim,
        num_attention_heads=num_attention_heads,
        num_key_value_heads=num_key_value_heads,
        tp_degree=1, dtype=jnp.float32, bias=True, key=k_mod)
    x_odd = jax.random.normal(jax.random.PRNGKey(1), (1, 5, d_in), jnp.float32)
    out_b = jax.block_until_ready(module_b(x_odd))
    ref_b = jnp.einsum("bsd,hd->bsh", x_odd, module_b.weight) + module_b.b
    assert jnp.allclose(out_b, ref_b, atol=1e-5, rtol=1e-5), "bias mismatch"

    # --- bf16 operands with f32 accumulation (scratch-accumulator path) -----
    module_bf = GroupQueryAttentionO(
        hidden_size=hidden_size, head_dim=head_dim,
        num_attention_heads=num_attention_heads,
        num_key_value_heads=num_key_value_heads,
        tp_degree=1, dtype=jnp.bfloat16, bias=True, key=k_mod)
    x_bf = jax.random.normal(jax.random.PRNGKey(2), (B, S, d_in),
                             jnp.float32).astype(jnp.bfloat16)
    out_bf = jax.block_until_ready(module_bf(x_bf))
    ref_bf = (jnp.einsum("bsd,hd->bsh", x_bf.astype(jnp.float32),
                         module_bf.weight.astype(jnp.float32))
              + module_bf.b.astype(jnp.float32))
    assert out_bf.dtype == jnp.bfloat16
    assert jnp.allclose(out_bf.astype(jnp.float32), ref_bf,
                        atol=2e-2, rtol=2e-2), "bf16 mismatch"

    print("KERNEL_OK")
</pallas_src>

<mosaic_0001>
module attributes {stable_mosaic.version = 11 : i64} {
  func.func @kernel(%arg0: i32, %arg1: i32, %arg2: i32, %arg3: memref<16x128xf32, #tpu.memory_space<vmem>>, %arg4: memref<128x128xf32, #tpu.memory_space<vmem>>, %arg5: memref<16x128xf32, #tpu.memory_space<vmem>>) attributes {dimension_semantics = [#tpu.dimension_semantics<parallel>, #tpu.dimension_semantics<parallel>, #tpu.dimension_semantics<arbitrary>], iteration_bounds = array<i64: 1, 1, 1>, scalar_prefetch = 0 : i64, scratch_operands = 0 : i64, tpu.core_type = #tpu.core_type<tc>, window_params = [{transform_indices = @transform_0, window_bounds = array<i64: 16, 128>}, {transform_indices = @transform_1, window_bounds = array<i64: 128, 128>}, {transform_indices = @transform_2, window_bounds = array<i64: 16, 128>}]} {
    %c0_i32 = arith.constant 0 : i32
    %0 = arith.cmpi eq, %arg2, %c0_i32 : i32
    %1 = arith.extui %0 : i1 to i32
    %c0_i32_0 = arith.constant 0 : i32
    %2 = arith.cmpi ne, %1, %c0_i32_0 : i32
    scf.if %2 {
      %cst_8 = arith.constant 0.000000e+00 : f32
      %9 = vector.broadcast %cst_8 : f32 to vector<16x128xf32>
      %c0_9 = arith.constant 0 : index
      %c0_10 = arith.constant 0 : index
      %10 = vector.load %arg5[%c0_9, %c0_10] : memref<16x128xf32, #tpu.memory_space<vmem>>, vector<16x128xf32>
      tpu.vector_store %arg5[%c0_9, %c0_10], %9 {strides = array<i32>} : memref<16x128xf32, #tpu.memory_space<vmem>>, vector<16x128xf32>,
    } else {
    }
    %c0 = arith.constant 0 : index
    %c0_1 = arith.constant 0 : index
    %3 = vector.load %arg5[%c0, %c0_1] : memref<16x128xf32, #tpu.memory_space<vmem>>, vector<16x128xf32>
    %c0_2 = arith.constant 0 : index
    %c0_3 = arith.constant 0 : index
    %4 = vector.load %arg3[%c0_2, %c0_3] : memref<16x128xf32, #tpu.memory_space<vmem>>, vector<16x128xf32>
    %c0_4 = arith.constant 0 : index
    %c0_5 = arith.constant 0 : index
    %5 = vector.load %arg4[%c0_4, %c0_5] : memref<128x128xf32, #tpu.memory_space<vmem>>, vector<128x128xf32>
    %cst = arith.constant dense<0.000000e+00> : vector<16x128xf32>
    %6 = tpu.matmul %4, %5, %cst {dimension_numbers = #tpu.dot_dimension_numbers<[1], [0], [0], [1], [0, 0, 1, 1], [], []>} : vector<16x128xf32>, vector<128x128xf32>, vector<16x128xf32> -> vector<16x128xf32>
    %7 = arith.addf %3, %6 : vector<16x128xf32>
    %c0_6 = arith.constant 0 : index
    %c0_7 = arith.constant 0 : index
    %8 = vector.load %arg5[%c0_6, %c0_7] : memref<16x128xf32, #tpu.memory_space<vmem>>, vector<16x128xf32>
    tpu.vector_store %arg5[%c0_6, %c0_7], %7 {strides = array<i32>} : memref<16x128xf32, #tpu.memory_space<vmem>>, vector<16x128xf32>,
    return
  }
  func.func @transform_0(%arg0: i32, %arg1: i32, %arg2: i32) -> (i32, i32) {
    %c0_i32 = arith.constant 0 : i32
    return %arg0, %arg2 : i32, i32
  }
  func.func @transform_1(%arg0: i32, %arg1: i32, %arg2: i32) -> (i32, i32) {
    %c0_i32 = arith.constant 0 : i32
    return %arg2, %arg1 : i32, i32
  }
  func.func @transform_2(%arg0: i32, %arg1: i32, %arg2: i32) -> (i32, i32) {
    %c0_i32 = arith.constant 0 : i32
    return %arg0, %arg1 : i32, i32
  }
}

</mosaic_0001>

<llo_original>
// kernel: o_proj_pallas.1
$region0: #{o_proj_pallas.1}
  #allocation0 [shape = 'u32[]', space=smem, size = 0x4, offset = 0x4, fixed_abs, tag = 'smem constant byte address 0x4 - core index']
  #allocation1 [shape = 'u32[144,128]{1,0:T(1,128)}', space=vmem, size = 0x12000, scoped, tag = 'internal scratch']
  %s0 = inlined_call_operand.vmem [shape: f32[16,128], index: 0, kind: input, shape index: {}]
  %s1 = inlined_call_operand.vmem [shape: f32[128,32], index: 1, kind: input, shape index: {}]
  %s2 = inlined_call_operand.hbm [shape: f32[16,32], index: 2, kind: output, shape index: {}]
  %s3 = sld [smem:[#allocation0]]
  $region22: #{o_proj_pallas.1} parent=0
    _
  %s5 = ssub.s32 1, %s3
  %s6 = scalar_select 0, %s5, %s3
  $region1: #{o_proj_pallas.1} parent=0
    #allocation2 [shape = 'u8[8192]{0}', space=vmem, size = 0x2000, scoped, tag = 'output window, operand 0, single buffered']
    #allocation3 [shape = 's32[1]{0}', space=sflag, size = 0x4, scoped, tag = 'scoped memory for o_proj_pallas.1']
    %7 = vsyncpa [#allocation3], 0
    // Predicated region
    $region2: #{o_proj_pallas.1} parent=1 // pred_check
      _
    $region3: #{o_proj_pallas.1} parent=1 // pred_check_branch
      %9 = sbr.rel (0) target = $region5
    $region4: #{o_proj_pallas.1} parent=1 // pred_region
      _
    $region5: #{o_proj_pallas.1} parent=1 // pred_fallthru
      _
    // Predicated region
    $region6: #{o_proj_pallas.1} parent=1 // pred_check
      _
    $region7: #{o_proj_pallas.1} parent=1 // pred_check_branch
      %11 = sbr.rel (0) target = $region9
    $region8: #{o_proj_pallas.1} parent=1 // pred_region
      _
    $region9: #{o_proj_pallas.1} parent=1 // pred_fallthru
      _
    %p12 = scmp.eq.s32.totalorder 0, 0
    // Predicated region
    $region10: #{o_proj_pallas.1} parent=1 // pred_check
      %p13 = pneg %p12
    $region11: #{o_proj_pallas.1} parent=1 // pred_check_branch
      %15 = sbr.rel (%p13) target = $region13
    $region12: #{o_proj_pallas.1} parent=1 // pred_region
      %16 = vst [vmem:[#allocation2] sm:$0xff] 0.0
      %17 = vst [vmem:[#allocation2 + $0x8] sm:$0xff] 0.0
    $region13: #{o_proj_pallas.1} parent=1 // pred_fallthru
      _
    %v18 = vld [vmem:[#allocation2] sm:$0xff]
    %v19 = vld [vmem:[#allocation2 + $0x8] sm:$0xff]
    %v20 = vld [vmem:[%s0] sm:$0xff]
    %v21 = vld [vmem:[%s0 + $0x8] sm:$0xff]
    %v22 = vld [vmem:[%s1] sm:$0xff]
    %v23 = vld [vmem:[%s1 + $0x8] sm:$0xff]
    %v24 = vld [vmem:[%s1 + $0x10] sm:$0xff]
    %v25 = vld [vmem:[%s1 + $0x18] sm:$0xff]
    %v26 = vld [vmem:[%s1 + $0x20] sm:$0xff]
    %v27 = vld [vmem:[%s1 + $0x28] sm:$0xff]
    %v28 = vld [vmem:[%s1 + $0x30] sm:$0xff]
    %v29 = vld [vmem:[%s1 + $0x38] sm:$0xff]
    %v30 = vld [vmem:[%s1 + $0x40] sm:$0xff]
    %v31 = vld [vmem:[%s1 + $0x48] sm:$0xff]
    %v32 = vld [vmem:[%s1 + $0x50] sm:$0xff]
    %v33 = vld [vmem:[%s1 + $0x58] sm:$0xff]
    %v34 = vld [vmem:[%s1 + $0x60] sm:$0xff]
    %v35 = vld [vmem:[%s1 + $0x68] sm:$0xff]
    %v36 = vld [vmem:[%s1 + $0x70] sm:$0xff]
    %v37 = vld [vmem:[%s1 + $0x78] sm:$0xff]
    %38 = vmatprep.subr.mxu0 0.0
    %39 = vmatpush1.msra.mxu0 %v37
    %40 = vmatprep.subr.mxu0 0.0
    %41 = vmatpush1.msra.mxu0 %v36
    %42 = vmatprep.subr.mxu0 0.0
    %43 = vmatpush1.msra.mxu0 %v35
    %44 = vmatprep.subr.mxu0 0.0
    %45 = vmatpush1.msra.mxu0 %v34
    %46 = vmatprep.subr.mxu0 0.0
    %47 = vmatpush1.msra.mxu0 %v33
    %48 = vmatprep.subr.mxu0 0.0
    %49 = vmatpush1.msra.mxu0 %v32
    %50 = vmatprep.subr.mxu0 0.0
    %51 = vmatpush1.msra.mxu0 %v31
    %52 = vmatprep.subr.mxu0 0.0
    %53 = vmatpush1.msra.mxu0 %v30
    %54 = vmatprep.subr.mxu0 0.0
    %55 = vmatpush1.msra.mxu0 %v29
    %56 = vmatprep.subr.mxu0 0.0
    %57 = vmatpush1.msra.mxu0 %v28
    %58 = vmatprep.subr.mxu0 0.0
    %59 = vmatpush1.msra.mxu0 %v27
    %60 = vmatprep.subr.mxu0 0.0
    %61 = vmatpush1.msra.mxu0 %v26
    %62 = vmatprep.subr.mxu0 0.0
    %63 = vmatpush1.msra.mxu0 %v25
    %64 = vmatprep.subr.mxu0 0.0
    %65 = vmatpush1.msra.mxu0 %v24
    %66 = vmatprep.subr.mxu0 0.0
    %67 = vmatpush1.msra.mxu0 %v23
    %68 = vmatprep.subr.mxu0 0.0
    %69 = vmatpush1.msra.mxu0 %v22
    %70 = vmatprep.subr.mxu0 0.0
    %71 = vmatpush2.msra.mxu0 0.0
    %72 = vmatprep.subr.mxu0 0.0
    %73 = vmatpush2.msra.mxu0 0.0
    %74 = vmatprep.subr.mxu0 0.0
    %75 = vmatpush2.msra.mxu0 0.0
    %76 = vmatprep.subr.mxu0 0.0
    %77 = vmatpush2.msra.mxu0 0.0
    %78 = vmatprep.subr.mxu0 0.0
    %79 = vmatpush2.msra.mxu0 0.0
    %80 = vmatprep.subr.mxu0 0.0
    %81 = vmatpush2.msra.mxu0 0.0
    %82 = vmatprep.subr.mxu0 0.0
    %83 = vmatpush2.msra.mxu0 0.0
    %84 = vmatprep.subr.mxu0 0.0
    %85 = vmatpush2.msra.mxu0 0.0
    %86 = vmatprep.subr.mxu0 0.0
    %87 = vmatpush2.msra.mxu0 0.0
    %88 = vmatprep.subr.mxu0 0.0
    %89 = vmatpush2.msra.mxu0 0.0
    %90 = vmatprep.subr.mxu0 0.0
    %91 = vmatpush2.msra.mxu0 0.0
    %92 = vmatprep.subr.mxu0 0.0
    %93 = vmatpush2.msra.mxu0 0.0
    %94 = vmatprep.subr.mxu0 0.0
    %95 = vmatpush2.msra.mxu0 0.0
    %96 = vmatprep.subr.mxu0 0.0
    %97 = vmatpush2.msra.mxu0 0.0
    %98 = vmatprep.subr.mxu0 0.0
    %99 = vmatpush2.msra.mxu0 0.0
    %100 = vmatprep.subr.mxu0 0.0
    %101 = vmatpush2.msra.mxu0 0.0
    %102 = vmatprep.mubr.f32.mxu0 0.0
    %103 = vmatmul.mubr.f32.gmra.mxu0 %v20
    %v104 = vpop.f32.mrf.mxu0
    %v105 = vadd.f32 0.0, %v104
    %v106 = vpop.f32.mrf.mxu0
    %107 = vmatprep.mubr.f32.mxu0 0.0
    %108 = vmatmul.mubr.f32.gmra.mxu0 %v21
    %v109 = vpop.f32.mrf.mxu0
    %v110 = vadd.f32 0.0, %v109
    %v111 = vpop.f32.mrf.mxu0
    %112 = vdwg.mxu0
    %v113 = vadd.f32 %v18, %v105
    %v114 = vadd.f32 %v19, %v110
    %115 = vst [vmem:[#allocation2] sm:$0xff] %v113
    %116 = vst [vmem:[#allocation2 + $0x8] sm:$0xff] %v114
    // Predicated region
    $region14: #{o_proj_pallas.1} parent=1 // pred_check
      _
    $region15: #{o_proj_pallas.1} parent=1 // pred_check_branch
      %118 = sbr.rel (0) target = $region17
    $region16: #{o_proj_pallas.1} parent=1 // pred_region
      %s120 = ssub.s32 256, 256
      %121 = vsyncadd [#allocation3], %s120
      %s122 = sshll.u32 [#allocation2], 4
      %s123 = int_to_ptr.vmem [resolvable:$true] %s122
      %128 = dma.vmem_to_hbm [thread:$0]  %s123, 256, %s2, [#allocation3], 128, 128, 8
    $region17: #{o_proj_pallas.1} parent=1 // pred_fallthru
      _
    // Predicated region
    $region18: #{o_proj_pallas.1} parent=1 // pred_check
      _
    $region19: #{o_proj_pallas.1} parent=1 // pred_check_branch
      %130 = sbr.rel (0) target = $region21
    $region20: #{o_proj_pallas.1} parent=1 // pred_region
      %131 = dma.done [#allocation3], 256
    $region21: #{o_proj_pallas.1} parent=1 // pred_fallthru
      _
    %132 = vsyncpa [#allocation3], 1

</llo_original>
